<compile_context>
chip_gen: v7x
topology: tpu7x:2x2x1
jax: 0.10.0
libtpu: 0.0.40
codegen_flags: <defaults>
</compile_context>

<pallas_src>
import jax
import jax.numpy as jnp
from jax import lax
from jax.experimental import pallas as pl
from jax.experimental.pallas import tpu as pltpu

# ---- small deterministic config (stand-ins for `config.*`) ----------------
HIDDEN = 32          # config.hidden_size
CO_EMB = 8           # config.co_emb          -> 2*CO_EMB = 16
N_REL  = 2           # n_relationships
B, S   = 2, 8        # batch, sequence length
VOCAB  = 64          # synthetic vocab for the embedding lookup
TWO_CO = 2 * CO_EMB                      # 16
D      = HIDDEN + TWO_CO                 # 48
D2     = D // 2                          # 24
NC     = D2 + 1                          # packed width: [linear1 feats | att score]


def gtminer_kernel(ids_ref, emb_ref, d_ref, wbig_ref, w2aug_ref, o_ref):
    """Whole batch in one invocation: fused gather + co_linear + attention head."""
    n_tok = ids_ref.shape[0]            # B*S (static)
    batch = d_ref.shape[0]              # B   (static)
    seq = n_tok // batch                # S   (static)

    # ---- fused embedding lookup (LM stand-in): one-hot matmul on the MXU ----
    ids = ids_ref[...]                                             # (BS, 1) i32
    iota = lax.broadcasted_iota(jnp.int32, (n_tok, VOCAB), 1)      # (BS, V)
    one_hot = (ids == iota).astype(jnp.float32)                    # (BS, V)
    pooled = jnp.dot(one_hot, emb_ref[...],
                     preferred_element_type=jnp.float32)           # (BS, H)

    # ---- packed, pre-folded weights ----------------------------------------
    wslab = wbig_ref[...]                                          # (H+3, NC)
    wtop  = wslab[:HIDDEN, :]                   # per-token columns (w_att hoisted in)
    wd    = wslab[HIDDEN:HIDDEN + 1, :]         # row scaled by d   (co_linear weight)
    wc    = wslab[HIDDEN + 1:HIDDEN + 2, :]     # constant row (co_b / b_att / ab)
    b1row = wslab[HIDDEN + 2:HIDDEN + 3, :D2]   # linear1 bias (NOT att-scaled)

    # One skinny matmul gives BOTH the attention-score column (col D2) and the
    # linear1 feature columns (cols [:D2]) for every token.
    proj_tok = jnp.dot(pooled, wtop, preferred_element_type=jnp.float32)  # (BS, NC)
    # co_linear + att_linear(d part) + linear1(d part) collapse to a broadcast FMA.
    proj_d = d_ref[...] * wd + wc                                  # (B, NC)

    rows = []
    for b in range(batch):              # static unroll; B is tiny
        pt = proj_tok[b * seq:(b + 1) * seq, :]                    # (S, NC)
        s = pt[:, D2:NC] + proj_d[b:b + 1, D2:NC]                  # (S, 1) scores

        # softmax over the sequence axis (torch dim=-2)
        m = jnp.max(s, axis=0, keepdims=True)
        e = jnp.exp(s - m)
        denom = jnp.sum(e, axis=0, keepdims=True)                  # (1, 1)
        inv = pl.reciprocal(denom, approx=True)                    # EUP slot (free)
        att = e * inv                                              # (S, 1)
        sum_att = denom * inv                                      # == sum(att)

        # aggregated linear1 pre-activation (w_att matmul already folded into wtop)
        feat_agg = jnp.sum(pt[:, :D2] * att, axis=0, keepdims=True)       # (1, D2)
        h = jnp.maximum(feat_agg + sum_att * proj_d[b:b + 1, :D2] + b1row, 0.0)
        # TODO(synk): nn.Dropout treated as identity (eval semantics); training-mode
        # dropout would need RNG threading into the kernel.

        out = (jnp.dot(h, w2aug_ref[:D2, :], preferred_element_type=jnp.float32)
               + w2aug_ref[D2:D2 + 1, :])                          # (1, R)

        # log_softmax over the relationship axis
        mo = jnp.max(out, axis=-1, keepdims=True)
        z = out - mo
        lse = jnp.log(jnp.sum(jnp.exp(z), axis=-1, keepdims=True))
        rows.append(z - lse)

    # single dense store of the whole batch result
    o_ref[...] = jnp.concatenate(rows, axis=0)                     # (B, R)


def _fold_params(params):
    """Host-side algebraic folding (exact): hoist W_att through att_linear and
    linear1, fold co_linear and all biases, pack everything into two slabs.
    (In practice this is done once and cached across forward calls.)"""
    W_att, b_att = params["w_att"], params["b_att"]
    aw_h, aw_c, ab = params["aw_h"], params["aw_c"], params["ab"]
    w1_h, w1_c, b1 = params["w1_h"], params["w1_c"], params["b1"]
    co_w, co_b = params["co_w"][None, :], params["co_b"][None, :]

    # columns [:D2] feed linear1, column [D2] feeds the attention score
    top = jnp.concatenate([W_att @ w1_h, W_att @ aw_h], axis=1)            # (H, NC)
    wd_row = jnp.concatenate([co_w @ w1_c, co_w @ aw_c], axis=1)           # (1, NC)
    wc_row = jnp.concatenate([co_b @ w1_c + b_att @ w1_h,
                              co_b @ aw_c + b_att @ aw_h + ab], axis=1)    # (1, NC)
    b1_row = jnp.concatenate([b1, jnp.zeros((1, 1), jnp.float32)], axis=1) # (1, NC)
    wbig = jnp.concatenate([top, wd_row, wc_row, b1_row], axis=0)          # (H+3, NC)
    w2aug = jnp.concatenate([params["w2"], params["b2"]], axis=0)          # (D2+1, R)
    return wbig, w2aug


def gtminer_forward(x_ids, d, att_mask, params):
    # TODO(synk): BertModel forward has no Pallas equivalent here; the language
    # model is substituted with a deterministic embedding-table lookup (fused into
    # the kernel as a one-hot matmul). `att_mask` is only consumed by the language
    # model, so it is unused downstream.
    del att_mask
    Bn, Sn = x_ids.shape
    wbig, w2aug = _fold_params(params)

    ids2d = x_ids.reshape(Bn * Sn, 1).astype(jnp.int32)
    d_col = d.reshape(Bn, 1).astype(jnp.float32)

    out = pl.pallas_call(
        gtminer_kernel,
        out_shape=jax.ShapeDtypeStruct((Bn, N_REL), jnp.float32),
        in_specs=[pl.BlockSpec(memory_space=pltpu.MemorySpace.VMEM)
                  for _ in range(5)],
        out_specs=pl.BlockSpec(memory_space=pltpu.MemorySpace.VMEM),
    )(ids2d, params["emb"].astype(jnp.float32), d_col, wbig, w2aug)
    return out                                                      # (B, N_REL)


def gtminer_reference(x_ids, d, att_mask, params):
    """Pure-JAX reference mirroring the torch forward (LM -> embedding lookup)."""
    del att_mask
    pooled = params["emb"][x_ids].astype(jnp.float32)               # (B, S, H)
    d_emb = d[:, None] * params["co_w"][None, :] + params["co_b"][None, :]   # (B, 2C)
    wa = pooled @ params["w_att"] + params["b_att"][0]              # (B, S, H)
    d_rep = jnp.broadcast_to(d_emb[:, None, :], (pooled.shape[0], pooled.shape[1], TWO_CO))
    cword = jnp.concatenate([wa, d_rep], axis=-1)                   # (B, S, D)
    aw = jnp.concatenate([params["aw_h"], params["aw_c"]], axis=0)  # (D, 1)
    logits = cword @ aw + params["ab"][0]                           # (B, S, 1)
    att = jax.nn.softmax(logits, axis=-2)
    agg = jnp.sum(cword * att, axis=1)                              # (B, D)
    w1 = jnp.concatenate([params["w1_h"], params["w1_c"]], axis=0)  # (D, D2)
    h = jax.nn.relu(agg @ w1 + params["b1"][0])
    out = h @ params["w2"] + params["b2"][0]
    return jax.nn.log_softmax(out, axis=1)


def init_params(key):
    ks = jax.random.split(key, 12)
    sc = 0.1
    return {
        "emb":   jax.random.normal(ks[0],  (VOCAB, HIDDEN), jnp.float32) * sc,
        "co_w":  jax.random.normal(ks[1],  (TWO_CO,),        jnp.float32) * sc,
        "co_b":  jax.random.normal(ks[2],  (TWO_CO,),        jnp.float32) * sc,
        "w_att": jax.random.normal(ks[3],  (HIDDEN, HIDDEN), jnp.float32) * sc,
        "b_att": jax.random.normal(ks[4],  (1, HIDDEN),      jnp.float32) * sc,
        "aw_h":  jax.random.normal(ks[5],  (HIDDEN, 1),      jnp.float32) * sc,
        "aw_c":  jax.random.normal(ks[6],  (TWO_CO, 1),      jnp.float32) * sc,
        "ab":    jax.random.normal(ks[7],  (1, 1),           jnp.float32) * sc,
        "w1_h":  jax.random.normal(ks[8],  (HIDDEN, D2),     jnp.float32) * sc,
        "w1_c":  jax.random.normal(ks[9],  (TWO_CO, D2),     jnp.float32) * sc,
        "b1":    jax.random.normal(ks[10], (1, D2),          jnp.float32) * sc,
        "w2":    jax.random.normal(ks[11], (D2, N_REL),      jnp.float32) * sc,
        "b2":    jnp.zeros((1, N_REL), jnp.float32),
    }


if __name__ == "__main__":
    key = jax.random.PRNGKey(0)
    k_p, k_x, k_d = jax.random.split(key, 3)
    params = init_params(k_p)

    x_ids    = jax.random.randint(k_x, (B, S), 0, VOCAB, dtype=jnp.int32)
    d        = jax.random.uniform(k_d, (B,), jnp.float32)
    att_mask = jnp.ones((B, S), jnp.int32)

    out = gtminer_forward(x_ids, d, att_mask, params)
    out = jax.block_until_ready(out)

    ref = gtminer_reference(x_ids, d, att_mask, params)
    assert out.shape == (B, N_REL)
    # tolerance relaxed vs 1e-5: approx EUP reciprocal in the softmax + hoisted
    # fp32 associativity (algebraically exact, numerically ~1e-4 level).
    assert jnp.allclose(out, ref, rtol=2e-3, atol=2e-3), (out, ref)
    print("KERNEL_OK")
</pallas_src>

<mosaic_0001>
module attributes {stable_mosaic.version = 11 : i64} {
  func.func @gtminer_kernel(%arg0: memref<16x1xi32, #tpu.memory_space<vmem>>, %arg1: memref<64x32xf32, #tpu.memory_space<vmem>>, %arg2: memref<2x1xf32, #tpu.memory_space<vmem>>, %arg3: memref<35x25xf32, #tpu.memory_space<vmem>>, %arg4: memref<25x2xf32, #tpu.memory_space<vmem>>, %arg5: memref<2x2xf32, #tpu.memory_space<vmem>>) attributes {dimension_semantics = [], scalar_prefetch = 0 : i64, scratch_operands = 0 : i64, tpu.core_type = #tpu.core_type<tc>} {
    %c0 = arith.constant 0 : index
    %c0_0 = arith.constant 0 : index
    %0 = vector.load %arg0[%c0, %c0_0] : memref<16x1xi32, #tpu.memory_space<vmem>>, vector<16x1xi32>
    %1 = tpu.iota {dimensions = array<i32: 1>} : vector<16x64xi32>
    %2 = vector.broadcast %0 : vector<16x1xi32> to vector<16x64xi32>
    %3 = arith.cmpi eq, %2, %1 : vector<16x64xi32>
    %4 = arith.extui %3 : vector<16x64xi1> to vector<16x64xi32>
    %5 = arith.sitofp %4 : vector<16x64xi32> to vector<16x64xf32>
    %c0_1 = arith.constant 0 : index
    %c0_2 = arith.constant 0 : index
    %6 = vector.load %arg1[%c0_1, %c0_2] : memref<64x32xf32, #tpu.memory_space<vmem>>, vector<64x32xf32>
    %cst = arith.constant dense<0.000000e+00> : vector<16x32xf32>
    %7 = tpu.matmul %5, %6, %cst {dimension_numbers = #tpu.dot_dimension_numbers<[1], [0], [0], [1], [0, 0, 1, 1], [], []>} : vector<16x64xf32>, vector<64x32xf32>, vector<16x32xf32> -> vector<16x32xf32>
    %c0_3 = arith.constant 0 : index
    %c0_4 = arith.constant 0 : index
    %8 = vector.load %arg3[%c0_3, %c0_4] : memref<35x25xf32, #tpu.memory_space<vmem>>, vector<35x25xf32>
    %9 = vector.extract_strided_slice %8 {offsets = [0, 0], sizes = [32, 25], strides = [1, 1]} : vector<35x25xf32> to vector<32x25xf32>
    %10 = vector.extract_strided_slice %8 {offsets = [32, 0], sizes = [1, 25], strides = [1, 1]} : vector<35x25xf32> to vector<1x25xf32>
    %11 = vector.extract_strided_slice %8 {offsets = [33, 0], sizes = [1, 25], strides = [1, 1]} : vector<35x25xf32> to vector<1x25xf32>
    %12 = vector.extract_strided_slice %8 {offsets = [34, 0], sizes = [1, 24], strides = [1, 1]} : vector<35x25xf32> to vector<1x24xf32>
    %cst_5 = arith.constant dense<0.000000e+00> : vector<16x25xf32>
    %13 = tpu.matmul %7, %9, %cst_5 {dimension_numbers = #tpu.dot_dimension_numbers<[1], [0], [0], [1], [0, 0, 1, 1], [], []>} : vector<16x32xf32>, vector<32x25xf32>, vector<16x25xf32> -> vector<16x25xf32>
    %c0_6 = arith.constant 0 : index
    %c0_7 = arith.constant 0 : index
    %14 = vector.load %arg2[%c0_6, %c0_7] : memref<2x1xf32, #tpu.memory_space<vmem>>, vector<2x1xf32>
    %15 = vector.broadcast %14 : vector<2x1xf32> to vector<2x25xf32>
    %16 = vector.broadcast %10 : vector<1x25xf32> to vector<2x25xf32>
    %17 = arith.mulf %15, %16 : vector<2x25xf32>
    %18 = vector.broadcast %11 : vector<1x25xf32> to vector<2x25xf32>
    %19 = arith.addf %17, %18 : vector<2x25xf32>
    %20 = vector.extract_strided_slice %13 {offsets = [0, 0], sizes = [8, 25], strides = [1, 1]} : vector<16x25xf32> to vector<8x25xf32>
    %21 = vector.extract_strided_slice %20 {offsets = [0, 24], sizes = [8, 1], strides = [1, 1]} : vector<8x25xf32> to vector<8x1xf32>
    %22 = vector.extract_strided_slice %19 {offsets = [0, 24], sizes = [1, 1], strides = [1, 1]} : vector<2x25xf32> to vector<1x1xf32>
    %23 = vector.broadcast %22 : vector<1x1xf32> to vector<8x1xf32>
    %24 = arith.addf %21, %23 : vector<8x1xf32>
    %cst_8 = arith.constant dense<0xFF800000> : vector<1xf32>
    %25 = vector.multi_reduction <maximumf>, %24, %cst_8 [0] : vector<8x1xf32> to vector<1xf32>
    %26 = vector.shape_cast %25 : vector<1xf32> to vector<1x1xf32>
    %27 = vector.broadcast %26 : vector<1x1xf32> to vector<8x1xf32>
    %28 = arith.subf %24, %27 : vector<8x1xf32>
    %29 = math.exp %28 : vector<8x1xf32>
    %cst_9 = arith.constant dense<0.000000e+00> : vector<1xf32>
    %30 = vector.multi_reduction <add>, %29, %cst_9 [0] : vector<8x1xf32> to vector<1xf32>
    %31 = vector.shape_cast %30 : vector<1xf32> to vector<1x1xf32>
    %32 = tpu.reciprocal %31 {approx = true} : vector<1x1xf32> -> vector<1x1xf32>
    %33 = vector.broadcast %32 : vector<1x1xf32> to vector<8x1xf32>
    %34 = arith.mulf %29, %33 : vector<8x1xf32>
    %35 = arith.mulf %31, %32 : vector<1x1xf32>
    %36 = vector.extract_strided_slice %20 {offsets = [0, 0], sizes = [8, 24], strides = [1, 1]} : vector<8x25xf32> to vector<8x24xf32>
    %37 = vector.broadcast %34 : vector<8x1xf32> to vector<8x24xf32>
    %38 = arith.mulf %36, %37 : vector<8x24xf32>
    %cst_10 = arith.constant dense<0.000000e+00> : vector<24xf32>
    %39 = vector.multi_reduction <add>, %38, %cst_10 [0] : vector<8x24xf32> to vector<24xf32>
    %40 = vector.shape_cast %39 : vector<24xf32> to vector<1x24xf32>
    %41 = vector.extract_strided_slice %19 {offsets = [0, 0], sizes = [1, 24], strides = [1, 1]} : vector<2x25xf32> to vector<1x24xf32>
    %42 = vector.broadcast %35 : vector<1x1xf32> to vector<1x24xf32>
    %43 = arith.mulf %42, %41 : vector<1x24xf32>
    %44 = arith.addf %40, %43 : vector<1x24xf32>
    %45 = arith.addf %44, %12 : vector<1x24xf32>
    %cst_11 = arith.constant 0.000000e+00 : f32
    %46 = vector.broadcast %cst_11 : f32 to vector<1x24xf32>
    %47 = arith.maximumf %45, %46 : vector<1x24xf32>
    %c0_12 = arith.constant 0 : index
    %c0_13 = arith.constant 0 : index
    %48 = vector.load %arg4[%c0_12, %c0_13] : memref<25x2xf32, #tpu.memory_space<vmem>>, vector<24x2xf32>
    %cst_14 = arith.constant dense<0.000000e+00> : vector<1x2xf32>
    %49 = tpu.matmul %47, %48, %cst_14 {dimension_numbers = #tpu.dot_dimension_numbers<[1], [0], [0], [1], [0, 0, 1, 1], [], []>} : vector<1x24xf32>, vector<24x2xf32>, vector<1x2xf32> -> vector<1x2xf32>
    %c24 = arith.constant 24 : index
    %c0_15 = arith.constant 0 : index
    %50 = vector.load %arg4[%c24, %c0_15] : memref<25x2xf32, #tpu.memory_space<vmem>>, vector<1x2xf32>
    %51 = arith.addf %49, %50 : vector<1x2xf32>
    %cst_16 = arith.constant dense<0xFF800000> : vector<1xf32>
    %52 = vector.multi_reduction <maximumf>, %51, %cst_16 [1] : vector<1x2xf32> to vector<1xf32>
    %53 = vector.shape_cast %52 : vector<1xf32> to vector<1x1xf32>
    %54 = vector.broadcast %53 : vector<1x1xf32> to vector<1x2xf32>
    %55 = arith.subf %51, %54 : vector<1x2xf32>
    %56 = math.exp %55 : vector<1x2xf32>
    %cst_17 = arith.constant dense<0.000000e+00> : vector<1xf32>
    %57 = vector.multi_reduction <add>, %56, %cst_17 [1] : vector<1x2xf32> to vector<1xf32>
    %58 = vector.shape_cast %57 : vector<1xf32> to vector<1x1xf32>
    %59 = math.log %58 : vector<1x1xf32>
    %60 = vector.broadcast %59 : vector<1x1xf32> to vector<1x2xf32>
    %61 = arith.subf %55, %60 : vector<1x2xf32>
    %62 = vector.extract_strided_slice %13 {offsets = [8, 0], sizes = [8, 25], strides = [1, 1]} : vector<16x25xf32> to vector<8x25xf32>
    %63 = vector.extract_strided_slice %62 {offsets = [0, 24], sizes = [8, 1], strides = [1, 1]} : vector<8x25xf32> to vector<8x1xf32>
    %64 = vector.extract_strided_slice %19 {offsets = [1, 24], sizes = [1, 1], strides = [1, 1]} : vector<2x25xf32> to vector<1x1xf32>
    %65 = vector.broadcast %64 : vector<1x1xf32> to vector<8x1xf32>
    %66 = arith.addf %63, %65 : vector<8x1xf32>
    %cst_18 = arith.constant dense<0xFF800000> : vector<1xf32>
    %67 = vector.multi_reduction <maximumf>, %66, %cst_18 [0] : vector<8x1xf32> to vector<1xf32>
    %68 = vector.shape_cast %67 : vector<1xf32> to vector<1x1xf32>
    %69 = vector.broadcast %68 : vector<1x1xf32> to vector<8x1xf32>
    %70 = arith.subf %66, %69 : vector<8x1xf32>
    %71 = math.exp %70 : vector<8x1xf32>
    %cst_19 = arith.constant dense<0.000000e+00> : vector<1xf32>
    %72 = vector.multi_reduction <add>, %71, %cst_19 [0] : vector<8x1xf32> to vector<1xf32>
    %73 = vector.shape_cast %72 : vector<1xf32> to vector<1x1xf32>
    %74 = tpu.reciprocal %73 {approx = true} : vector<1x1xf32> -> vector<1x1xf32>
    %75 = vector.broadcast %74 : vector<1x1xf32> to vector<8x1xf32>
    %76 = arith.mulf %71, %75 : vector<8x1xf32>
    %77 = arith.mulf %73, %74 : vector<1x1xf32>
    %78 = vector.extract_strided_slice %62 {offsets = [0, 0], sizes = [8, 24], strides = [1, 1]} : vector<8x25xf32> to vector<8x24xf32>
    %79 = vector.broadcast %76 : vector<8x1xf32> to vector<8x24xf32>
    %80 = arith.mulf %78, %79 : vector<8x24xf32>
    %cst_20 = arith.constant dense<0.000000e+00> : vector<24xf32>
    %81 = vector.multi_reduction <add>, %80, %cst_20 [0] : vector<8x24xf32> to vector<24xf32>
    %82 = vector.shape_cast %81 : vector<24xf32> to vector<1x24xf32>
    %83 = vector.extract_strided_slice %19 {offsets = [1, 0], sizes = [1, 24], strides = [1, 1]} : vector<2x25xf32> to vector<1x24xf32>
    %84 = vector.broadcast %77 : vector<1x1xf32> to vector<1x24xf32>
    %85 = arith.mulf %84, %83 : vector<1x24xf32>
    %86 = arith.addf %82, %85 : vector<1x24xf32>
    %87 = arith.addf %86, %12 : vector<1x24xf32>
    %cst_21 = arith.constant 0.000000e+00 : f32
    %88 = vector.broadcast %cst_21 : f32 to vector<1x24xf32>
    %89 = arith.maximumf %87, %88 : vector<1x24xf32>
    %c0_22 = arith.constant 0 : index
    %c0_23 = arith.constant 0 : index
    %90 = vector.load %arg4[%c0_22, %c0_23] : memref<25x2xf32, #tpu.memory_space<vmem>>, vector<24x2xf32>
    %cst_24 = arith.constant dense<0.000000e+00> : vector<1x2xf32>
    %91 = tpu.matmul %89, %90, %cst_24 {dimension_numbers = #tpu.dot_dimension_numbers<[1], [0], [0], [1], [0, 0, 1, 1], [], []>} : vector<1x24xf32>, vector<24x2xf32>, vector<1x2xf32> -> vector<1x2xf32>
    %c24_25 = arith.constant 24 : index
    %c0_26 = arith.constant 0 : index
    %92 = vector.load %arg4[%c24_25, %c0_26] : memref<25x2xf32, #tpu.memory_space<vmem>>, vector<1x2xf32>
    %93 = arith.addf %91, %92 : vector<1x2xf32>
    %cst_27 = arith.constant dense<0xFF800000> : vector<1xf32>
    %94 = vector.multi_reduction <maximumf>, %93, %cst_27 [1] : vector<1x2xf32> to vector<1xf32>
    %95 = vector.shape_cast %94 : vector<1xf32> to vector<1x1xf32>
    %96 = vector.broadcast %95 : vector<1x1xf32> to vector<1x2xf32>
    %97 = arith.subf %93, %96 : vector<1x2xf32>
    %98 = math.exp %97 : vector<1x2xf32>
    %cst_28 = arith.constant dense<0.000000e+00> : vector<1xf32>
    %99 = vector.multi_reduction <add>, %98, %cst_28 [1] : vector<1x2xf32> to vector<1xf32>
    %100 = vector.shape_cast %99 : vector<1xf32> to vector<1x1xf32>
    %101 = math.log %100 : vector<1x1xf32>
    %102 = vector.broadcast %101 : vector<1x1xf32> to vector<1x2xf32>
    %103 = arith.subf %97, %102 : vector<1x2xf32>
    %104 = tpu.concatenate %61, %103 in 0 : vector<1x2xf32>, vector<1x2xf32> -> vector<2x2xf32>
    %c0_29 = arith.constant 0 : index
    %c0_30 = arith.constant 0 : index
    %105 = vector.load %arg5[%c0_29, %c0_30] : memref<2x2xf32, #tpu.memory_space<vmem>>, vector<2x2xf32>
    tpu.vector_store %arg5[%c0_29, %c0_30], %104 {strides = array<i32>} : memref<2x2xf32, #tpu.memory_space<vmem>>, vector<2x2xf32>,
    return
  }
}

</mosaic_0001>

<llo_original>
// kernel: tpu_custom_call.1
$region0: #{tpu_custom_call.1}
  #allocation0 [shape = 'u32[]', space=smem, size = 0x4, offset = 0x4, fixed_abs, tag = 'smem constant byte address 0x4 - core index']
  #allocation1 [shape = 'u32[144,128]{1,0:T(1,128)}', space=vmem, size = 0x12000, scoped, tag = 'internal scratch']
  %s0 = inlined_call_operand.vmem [shape: s32[16,1], index: 0, kind: input, shape index: {}]
  %s1 = inlined_call_operand.vmem [shape: f32[64,32], index: 1, kind: input, shape index: {}]
  %s2 = inlined_call_operand.vmem [shape: f32[2,1], index: 2, kind: input, shape index: {}]
  %s3 = inlined_call_operand.vmem [shape: f32[35,25], index: 3, kind: input, shape index: {}]
  %s4 = inlined_call_operand.vmem [shape: f32[25,2], index: 4, kind: input, shape index: {}]
  %s5 = inlined_call_operand.hbm [shape: f32[2,2], index: 5, kind: output, shape index: {}]
  %s6 = sld [smem:[#allocation0]]
  $region30: #{tpu_custom_call.1} parent=0
    _
  %s8 = ssub.s32 1, %s6
  %s9 = scalar_select 0, %s8, %s6
  $region1: #{tpu_custom_call.1} parent=0
    #allocation2 [shape = 'u8[1024]{0}', space=vmem, size = 0x400, scoped, tag = 'output window, operand 0, single buffered']
    #allocation3 [shape = 's32[1]{0}', space=sflag, size = 0x4, scoped, tag = 'scoped memory for tpu_custom_call.1']
    %10 = vsyncpa [#allocation3], 0
    // Predicated region
    $region2: #{tpu_custom_call.1} parent=1 // pred_check
      _
    $region3: #{tpu_custom_call.1} parent=1 // pred_check_branch
      %12 = sbr.rel (0) target = $region5
    $region4: #{tpu_custom_call.1} parent=1 // pred_region
      _
    $region5: #{tpu_custom_call.1} parent=1 // pred_fallthru
      _
    // Predicated region
    $region6: #{tpu_custom_call.1} parent=1 // pred_check
      _
    $region7: #{tpu_custom_call.1} parent=1 // pred_check_branch
      %14 = sbr.rel (0) target = $region9
    $region8: #{tpu_custom_call.1} parent=1 // pred_region
      _
    $region9: #{tpu_custom_call.1} parent=1 // pred_fallthru
      _
    // Predicated region
    $region10: #{tpu_custom_call.1} parent=1 // pred_check
      _
    $region11: #{tpu_custom_call.1} parent=1 // pred_check_branch
      %16 = sbr.rel (0) target = $region13
    $region12: #{tpu_custom_call.1} parent=1 // pred_region
      _
    $region13: #{tpu_custom_call.1} parent=1 // pred_fallthru
      _
    // Predicated region
    $region14: #{tpu_custom_call.1} parent=1 // pred_check
      _
    $region15: #{tpu_custom_call.1} parent=1 // pred_check_branch
      %18 = sbr.rel (0) target = $region17
    $region16: #{tpu_custom_call.1} parent=1 // pred_region
      _
    $region17: #{tpu_custom_call.1} parent=1 // pred_fallthru
      _
    // Predicated region
    $region18: #{tpu_custom_call.1} parent=1 // pred_check
      _
    $region19: #{tpu_custom_call.1} parent=1 // pred_check_branch
      %20 = sbr.rel (0) target = $region21
    $region20: #{tpu_custom_call.1} parent=1 // pred_region
      _
    $region21: #{tpu_custom_call.1} parent=1 // pred_fallthru
      _
    %v21 = vld [vmem:[%s0] sm:$0xff]
    %v22 = vld [vmem:[%s0 + $0x8] sm:$0xff]
    %v23 = vlaneseq
    %v24 = vand.u32 %v23, 127
    %25 = vset.pattern.permute.xlu0 0
    %26 = vperm.xlu0 %25, %v21
    %v27 = vpop.permute.xlu0 %26
    %28 = vset.pattern.permute.xlu0 0
    %29 = vperm.xlu0 %28, %v22
    %v30 = vpop.permute.xlu0 %29
    %vm31 = vcmp.eq.s32.totalorder %v27, %v24
    %vm32 = vcmp.eq.s32.totalorder %v30, %v24
    %v33 = vsel %vm31, 1, 0
    %v34 = vsel %vm32, 1, 0
    %v35 = vcvt.s32.f32 %v33
    %v36 = vcvt.s32.f32 %v34
    %v37 = vld [vmem:[%s1] sm:$0xff]
    %v38 = vld [vmem:[%s1 + $0x8] sm:$0xff]
    %v39 = vld [vmem:[%s1 + $0x10] sm:$0xff]
    %v40 = vld [vmem:[%s1 + $0x18] sm:$0xff]
    %v41 = vld [vmem:[%s1 + $0x20] sm:$0xff]
    %v42 = vld [vmem:[%s1 + $0x28] sm:$0xff]
    %v43 = vld [vmem:[%s1 + $0x30] sm:$0xff]
    %v44 = vld [vmem:[%s1 + $0x38] sm:$0xff]
    %vm45 = vcmask 523264
    %v47 = vsel %vm45, %v35, 0
    %v50 = vsel %vm45, %v36, 0
    %52 = vmatprep.subr.mxu0 0.0
    %53 = vmatpush1.msra.mxu0 %v37
    %54 = vmatprep.subr.mxu0 0.0
    %55 = vmatpush1.msra.mxu0 %v38
    %56 = vmatprep.subr.mxu0 0.0
    %57 = vmatpush1.msra.mxu0 %v39
    %58 = vmatprep.subr.mxu0 0.0
    %59 = vmatpush1.msra.mxu0 %v40
    %60 = vmatprep.subr.mxu0 0.0
    %61 = vmatpush1.msra.mxu0 %v41
    %62 = vmatprep.subr.mxu0 0.0
    %63 = vmatpush1.msra.mxu0 %v42
    %64 = vmatprep.subr.mxu0 0.0
    %65 = vmatpush1.msra.mxu0 %v43
    %66 = vmatprep.subr.mxu0 0.0
    %67 = vmatpush1.msra.mxu0 %v44
    %68 = vmatprep.subr.mxu0 0.0
    %69 = vmatpush1.msra.mxu0 0.0
    %70 = vmatprep.subr.mxu0 0.0
    %71 = vmatpush1.msra.mxu0 0.0
    %72 = vmatprep.subr.mxu0 0.0
    %73 = vmatpush1.msra.mxu0 0.0
    %74 = vmatprep.subr.mxu0 0.0
    %75 = vmatpush1.msra.mxu0 0.0
    %76 = vmatprep.subr.mxu0 0.0
    %77 = vmatpush1.msra.mxu0 0.0
    %78 = vmatprep.subr.mxu0 0.0
    %79 = vmatpush1.msra.mxu0 0.0
    %80 = vmatprep.subr.mxu0 0.0
    %81 = vmatpush1.msra.mxu0 0.0
    %82 = vmatprep.subr.mxu0 0.0
    %83 = vmatpush1.msra.mxu0 0.0
    %84 = vmatprep.subr.mxu0 0.0
    %85 = vmatpush1.msra.mxu0 0.0
    %86 = vmatprep.subr.mxu0 0.0
    %87 = vmatpush1.msra.mxu0 0.0
    %88 = vmatprep.subr.mxu0 0.0
    %89 = vmatpush1.msra.mxu0 0.0
    %90 = vmatprep.subr.mxu0 0.0
    %91 = vmatpush1.msra.mxu0 0.0
    %92 = vmatprep.subr.mxu0 0.0
    %93 = vmatpush1.msra.mxu0 0.0
    %94 = vmatprep.subr.mxu0 0.0
    %95 = vmatpush1.msra.mxu0 0.0
    %96 = vmatprep.subr.mxu0 0.0
    %97 = vmatpush1.msra.mxu0 0.0
    %98 = vmatprep.subr.mxu0 0.0
    %99 = vmatpush1.msra.mxu0 0.0
    %100 = vmatprep.subr.mxu0 0.0
    %101 = vmatpush1.msra.mxu0 0.0
    %102 = vmatprep.subr.mxu0 0.0
    %103 = vmatpush1.msra.mxu0 0.0
    %104 = vmatprep.subr.mxu0 0.0
    %105 = vmatpush1.msra.mxu0 0.0
    %106 = vmatprep.subr.mxu0 0.0
    %107 = vmatpush1.msra.mxu0 0.0
    %108 = vmatprep.subr.mxu0 0.0
    %109 = vmatpush1.msra.mxu0 0.0
    %110 = vmatprep.subr.mxu0 0.0
    %111 = vmatpush1.msra.mxu0 0.0
    %112 = vmatprep.subr.mxu0 0.0
    %113 = vmatpush1.msra.mxu0 0.0
    %114 = vmatprep.subr.mxu0 0.0
    %115 = vmatpush1.msra.mxu0 0.0
    %116 = vmatprep.mubr.f32.mxu0 0.0
    %117 = vmatmul.mubr.f32.gmra.mrb[0].mxu0 %v47
    %v118 = vpop.f32.mrb[0].mxu0
    %v119 = vadd.f32 0.0, %v118
    %v120 = vpop.f32.mrb[0].mxu0
    %121 = vmatprep.mubr.f32.mxu0 0.0
    %122 = vmatmul.mubr.f32.gmra.mrb[0].mxu0 %v50
    %v123 = vpop.f32.mrb[0].mxu0
    %v124 = vadd.f32 0.0, %v123
    %v125 = vpop.f32.mrb[0].mxu0
    %126 = vdwg.mxu0
    %v127 = vld [vmem:[%s3] sm:$0xff]
    %v128 = vld [vmem:[%s3 + $0x8] sm:$0xff]
    %v129 = vld [vmem:[%s3 + $0x10] sm:$0xff]
    %v130 = vld [vmem:[%s3 + $0x18] sm:$0xff]
    %v131 = vld [vmem:[%s3 + $0x20] sm:$0x7]
    %vm132 = vcmask 261120
    %v134 = vsel %vm132, %v119, 0
    %v137 = vsel %vm132, %v124, 0
    %139 = vmatprep.subr.mxu0 0.0
    %140 = vmatpush1.msra.mxu0 %v127
    %141 = vmatprep.subr.mxu0 0.0
    %142 = vmatpush1.msra.mxu0 %v128
    %143 = vmatprep.subr.mxu0 0.0
    %144 = vmatpush1.msra.mxu0 %v129
    %145 = vmatprep.subr.mxu0 0.0
    %146 = vmatpush1.msra.mxu0 %v130
    %147 = vmatprep.subr.mxu0 0.0
    %148 = vmatpush1.msra.mxu0 0.0
    %149 = vmatprep.subr.mxu0 0.0
    %150 = vmatpush1.msra.mxu0 0.0
    %151 = vmatprep.subr.mxu0 0.0
    %152 = vmatpush1.msra.mxu0 0.0
    %153 = vmatprep.subr.mxu0 0.0
    %154 = vmatpush1.msra.mxu0 0.0
    %155 = vmatprep.subr.mxu0 0.0
    %156 = vmatpush1.msra.mxu0 0.0
    %157 = vmatprep.subr.mxu0 0.0
    %158 = vmatpush1.msra.mxu0 0.0
    %159 = vmatprep.subr.mxu0 0.0
    %160 = vmatpush1.msra.mxu0 0.0
    %161 = vmatprep.subr.mxu0 0.0
    %162 = vmatpush1.msra.mxu0 0.0
    %163 = vmatprep.subr.mxu0 0.0
    %164 = vmatpush1.msra.mxu0 0.0
    %165 = vmatprep.subr.mxu0 0.0
    %166 = vmatpush1.msra.mxu0 0.0
    %167 = vmatprep.subr.mxu0 0.0
    %168 = vmatpush1.msra.mxu0 0.0
    %169 = vmatprep.subr.mxu0 0.0
    %170 = vmatpush1.msra.mxu0 0.0
    %171 = vmatprep.subr.mxu0 0.0
    %172 = vmatpush1.msra.mxu0 0.0
    %173 = vmatprep.subr.mxu0 0.0
    %174 = vmatpush1.msra.mxu0 0.0
    %175 = vmatprep.subr.mxu0 0.0
    %176 = vmatpush1.msra.mxu0 0.0
    %177 = vmatprep.subr.mxu0 0.0
    %178 = vmatpush1.msra.mxu0 0.0
    %179 = vmatprep.subr.mxu0 0.0
    %180 = vmatpush1.msra.mxu0 0.0
    %181 = vmatprep.subr.mxu0 0.0
    %182 = vmatpush1.msra.mxu0 0.0
    %183 = vmatprep.subr.mxu0 0.0
    %184 = vmatpush1.msra.mxu0 0.0
    %185 = vmatprep.subr.mxu0 0.0
    %186 = vmatpush1.msra.mxu0 0.0
    %187 = vmatprep.subr.mxu0 0.0
    %188 = vmatpush1.msra.mxu0 0.0
    %189 = vmatprep.subr.mxu0 0.0
    %190 = vmatpush1.msra.mxu0 0.0
    %191 = vmatprep.subr.mxu0 0.0
    %192 = vmatpush1.msra.mxu0 0.0
    %193 = vmatprep.subr.mxu0 0.0
    %194 = vmatpush1.msra.mxu0 0.0
    %195 = vmatprep.subr.mxu0 0.0
    %196 = vmatpush1.msra.mxu0 0.0
    %197 = vmatprep.subr.mxu0 0.0
    %198 = vmatpush1.msra.mxu0 0.0
    %199 = vmatprep.subr.mxu0 0.0
    %200 = vmatpush1.msra.mxu0 0.0
    %201 = vmatprep.subr.mxu0 0.0
    %202 = vmatpush1.msra.mxu0 0.0
    %203 = vmatprep.mubr.f32.mxu0 0.0
    %204 = vmatmul.mubr.f32.gmra.mrb[0].mxu0 %v134
    %v205 = vpop.f32.mrb[0].mxu0
    %v206 = vadd.f32 0.0, %v205
    %v207 = vpop.f32.mrb[0].mxu0
    %208 = vmatprep.mubr.f32.mxu0 0.0
    %209 = vmatmul.mubr.f32.gmra.mrb[0].mxu0 %v137
    %v210 = vpop.f32.mrb[0].mxu0
    %v211 = vadd.f32 0.0, %v210
    %v212 = vpop.f32.mrb[0].mxu0
    %213 = vdwg.mxu0
    %v214 = vld [vmem:[%s2] sm:$0x3]
    %216 = vset.pattern.permute.xlu0 0
    %217 = vperm.xlu0 %216, %v214
    %v218 = vpop.permute.xlu0 %217
    %v220 = vlaneseq
    %v221 = vshrl.u32 %v220, 7
    %v222 = vsub.s32 0, %v221
    %v223 = vrot.slane %v131, %v222
    %v224 = vmul.f32 %v218, %v223
    %v225 = vlaneseq
    %v226 = vshrl.u32 %v225, 7
    %v227 = vsub.s32 1, %v226
    %v228 = vrot.slane %v131, %v227
    %v229 = vadd.f32 %v224, %v228
    %v230 = vlaneseq
    %v231 = vshrl.u32 %v230, 7
    %v232 = vsub.s32 0, %v231
    %v233 = vrot.slane %v229, %v232
    %v234 = vadd.f32 %v206, %v233
    %vm235 = vcmask 203968
    %v236 = vsel %vm235, %v234, -inf
    %v237 = vrot.slane %v236, 4
    %v238 = vmax.f32 %v236, %v237
    %v239 = vrot.slane %v238, 2
    %v240 = vmax.f32 %v238, %v239
    %v241 = vrot.slane %v240, 1
    %v242 = vmax.f32 %v240, %v241
    %v243 = vsub.f32 %v234, %v242
    %v244 = vmul.f32 %v243, 1.442695
    %v245 = vpow.pop %v244
    %v246 = vsel %vm235, %v245, 0.0
    %v247 = vrot.slane %v246, 4
    %v248 = vadd.f32 %v246, %v247
    %v249 = vrot.slane %v248, 2
    %v250 = vadd.f32 %v248, %v249
    %v251 = vrot.slane %v250, 1
    %v252 = vadd.f32 %v250, %v251
    %v253 = vrcp.pop %v252
    %v254 = vmul.f32 %v245, %v253
    %v255 = vmul.f32 %v252, %v253
    %257 = vset.pattern.permute.xlu0 24
    %258 = vperm.xlu0 %257, %v254
    %v259 = vpop.permute.xlu0 %258
    %v261 = vmul.f32 %v206, %v259
    %vm262 = vcmask 195584
    %v263 = vsel %vm262, %v261, 0.0
    %v264 = vrot.slane %v263, 4
    %v265 = vadd.f32 %v263, %v264
    %v266 = vrot.slane %v265, 2
    %v267 = vadd.f32 %v265, %v266
    %v268 = vrot.slane %v267, 1
    %v269 = vadd.f32 %v267, %v268
    %271 = vset.pattern.permute.xlu0 24
    %272 = vperm.xlu0 %271, %v255
    %v273 = vpop.permute.xlu0 %272
    %v275 = vmul.f32 %v273, %v229
    %v276 = vadd.f32 %v269, %v275
    %v278 = vrot.slane %v131, 2
    %v280 = vadd.f32 %v276, %v278
    %v281 = vmax.f32 %v280, 0.0
    %v282 = vld [vmem:[%s4] sm:$0xff]
    %v283 = vld [vmem:[%s4 + $0x8] sm:$0xff]
    %v284 = vld [vmem:[%s4 + $0x10] sm:$0xff]
    %v285 = vld [vmem:[%s4 + $0x18] sm:$0x1]
    %v287 = vsel %vm262, %v281, 0
    %289 = vmatprep.subr.mxu0 0.0
    %290 = vmatpush1.msra.mxu0 %v282
    %291 = vmatprep.subr.mxu0 0.0
    %292 = vmatpush1.msra.mxu0 %v283
    %293 = vmatprep.subr.mxu0 0.0
    %294 = vmatpush1.msra.mxu0 %v284
    %295 = vmatprep.subr.mxu0 0.0
    %296 = vmatpush1.msra.mxu0 0.0
    %297 = vmatprep.subr.mxu0 0.0
    %298 = vmatpush1.msra.mxu0 0.0
    %299 = vmatprep.subr.mxu0 0.0
    %300 = vmatpush1.msra.mxu0 0.0
    %301 = vmatprep.subr.mxu0 0.0
    %302 = vmatpush1.msra.mxu0 0.0
    %303 = vmatprep.subr.mxu0 0.0
    %304 = vmatpush1.msra.mxu0 0.0
    %305 = vmatprep.subr.mxu0 0.0
    %306 = vmatpush1.msra.mxu0 0.0
    %307 = vmatprep.subr.mxu0 0.0
    %308 = vmatpush1.msra.mxu0 0.0
    %309 = vmatprep.subr.mxu0 0.0
    %310 = vmatpush1.msra.mxu0 0.0
    %311 = vmatprep.subr.mxu0 0.0
    %312 = vmatpush1.msra.mxu0 0.0
    %313 = vmatprep.subr.mxu0 0.0
    %314 = vmatpush1.msra.mxu0 0.0
    %315 = vmatprep.subr.mxu0 0.0
    %316 = vmatpush1.msra.mxu0 0.0
    %317 = vmatprep.subr.mxu0 0.0
    %318 = vmatpush1.msra.mxu0 0.0
    %319 = vmatprep.subr.mxu0 0.0
    %320 = vmatpush1.msra.mxu0 0.0
    %321 = vmatprep.subr.mxu0 0.0
    %322 = vmatpush1.msra.mxu0 0.0
    %323 = vmatprep.subr.mxu0 0.0
    %324 = vmatpush1.msra.mxu0 0.0
    %325 = vmatprep.subr.mxu0 0.0
    %326 = vmatpush1.msra.mxu0 0.0
    %327 = vmatprep.subr.mxu0 0.0
    %328 = vmatpush1.msra.mxu0 0.0
    %329 = vmatprep.subr.mxu0 0.0
    %330 = vmatpush1.msra.mxu0 0.0
    %331 = vmatprep.subr.mxu0 0.0
    %332 = vmatpush1.msra.mxu0 0.0
    %333 = vmatprep.subr.mxu0 0.0
    %334 = vmatpush1.msra.mxu0 0.0
    %335 = vmatprep.subr.mxu0 0.0
    %336 = vmatpush1.msra.mxu0 0.0
    %337 = vmatprep.subr.mxu0 0.0
    %338 = vmatpush1.msra.mxu0 0.0
    %339 = vmatprep.subr.mxu0 0.0
    %340 = vmatpush1.msra.mxu0 0.0
    %341 = vmatprep.subr.mxu0 0.0
    %342 = vmatpush1.msra.mxu0 0.0
    %343 = vmatprep.subr.mxu0 0.0
    %344 = vmatpush1.msra.mxu0 0.0
    %345 = vmatprep.subr.mxu0 0.0
    %346 = vmatpush1.msra.mxu0 0.0
    %347 = vmatprep.subr.mxu0 0.0
    %348 = vmatpush1.msra.mxu0 0.0
    %349 = vmatprep.subr.mxu0 0.0
    %350 = vmatpush1.msra.mxu0 0.0
    %351 = vmatprep.subr.mxu0 0.0
    %352 = vmatpush1.msra.mxu0 0.0
    %353 = vmatprep.mubr.f32.mxu0 0.0
    %354 = vmatmul.mubr.f32.gmra.mrb[0].mxu0 %v287
    %v355 = vpop.f32.mrb[0].mxu0
    %v356 = vadd.f32 %v285, %v355
    %v357 = vpop.f32.mrb[0].mxu0
    %358 = vdwg.mxu0
    %vm359 = vcmask 8192
    %v360 = vsel %vm359, %v356, -inf
    %361 = vmax.xlane.f32.xlu0 %v360
    %v362 = vpop.xlane.xlu0 %361
    %v363 = vsub.f32 %v356, %v362
    %v364 = vmul.f32 %v363, 1.442695
    %v365 = vpow.pop %v364
    %v366 = vsel %vm359, %v365, 0.0
    %367 = vadd.xlane.f32.xlu0 %v366
    %v368 = vpop.xlane.xlu0 %367
    %v369 = vlog2.pop %v368
    %v370 = vmul.f32 %v369, 0.6931472
    %v371 = vsub.f32 %v363, %v370
    %v372 = vlaneseq
    %v373 = vshrl.u32 %v372, 7
    %v374 = vsub.s32 1, %v373
    %v375 = vrot.slane %v229, %v374
    %v376 = vadd.f32 %v211, %v375
    %v377 = vsel %vm235, %v376, -inf
    %v378 = vrot.slane %v377, 4
    %v379 = vmax.f32 %v377, %v378
    %v380 = vrot.slane %v379, 2
    %v381 = vmax.f32 %v379, %v380
    %v382 = vrot.slane %v381, 1
    %v383 = vmax.f32 %v381, %v382
    %v384 = vsub.f32 %v376, %v383
    %v385 = vmul.f32 %v384, 1.442695
    %v386 = vpow.pop %v385
    %v387 = vsel %vm235, %v386, 0.0
    %v388 = vrot.slane %v387, 4
    %v389 = vadd.f32 %v387, %v388
    %v390 = vrot.slane %v389, 2
    %v391 = vadd.f32 %v389, %v390
    %v392 = vrot.slane %v391, 1
    %v393 = vadd.f32 %v391, %v392
    %v394 = vrcp.pop %v393
    %v395 = vmul.f32 %v386, %v394
    %v396 = vmul.f32 %v393, %v394
    %398 = vset.pattern.permute.xlu0 24
    %399 = vperm.xlu0 %398, %v395
    %v400 = vpop.permute.xlu0 %399
    %v402 = vmul.f32 %v211, %v400
    %v403 = vsel %vm262, %v402, 0.0
    %v404 = vrot.slane %v403, 4
    %v405 = vadd.f32 %v403, %v404
    %v406 = vrot.slane %v405, 2
    %v407 = vadd.f32 %v405, %v406
    %v408 = vrot.slane %v407, 1
    %v409 = vadd.f32 %v407, %v408
    %411 = vset.pattern.permute.xlu0 24
    %412 = vperm.xlu0 %411, %v396
    %v413 = vpop.permute.xlu0 %412
    %v415 = vmul.f32 %v413, %v229
    %v416 = vadd.f32 %v409, %v415
    %v417 = vrot.slane %v131, 1
    %v419 = vadd.f32 %v416, %v417
    %v420 = vmax.f32 %v419, 0.0
    %v422 = vrot.slane %v420, 1
    %v423 = vsel %vm262, %v422, 0
    %425 = vmatprep.subr.mxu0 0.0
    %426 = vmatpush1.msra.mxu0 %v282
    %427 = vmatprep.subr.mxu0 0.0
    %428 = vmatpush1.msra.mxu0 %v283
    %429 = vmatprep.subr.mxu0 0.0
    %430 = vmatpush1.msra.mxu0 %v284
    %431 = vmatprep.subr.mxu0 0.0
    %432 = vmatpush1.msra.mxu0 0.0
    %433 = vmatprep.subr.mxu0 0.0
    %434 = vmatpush1.msra.mxu0 0.0
    %435 = vmatprep.subr.mxu0 0.0
    %436 = vmatpush1.msra.mxu0 0.0
    %437 = vmatprep.subr.mxu0 0.0
    %438 = vmatpush1.msra.mxu0 0.0
    %439 = vmatprep.subr.mxu0 0.0
    %440 = vmatpush1.msra.mxu0 0.0
    %441 = vmatprep.subr.mxu0 0.0
    %442 = vmatpush1.msra.mxu0 0.0
    %443 = vmatprep.subr.mxu0 0.0
    %444 = vmatpush1.msra.mxu0 0.0
    %445 = vmatprep.subr.mxu0 0.0
    %446 = vmatpush1.msra.mxu0 0.0
    %447 = vmatprep.subr.mxu0 0.0
    %448 = vmatpush1.msra.mxu0 0.0
    %449 = vmatprep.subr.mxu0 0.0
    %450 = vmatpush1.msra.mxu0 0.0
    %451 = vmatprep.subr.mxu0 0.0
    %452 = vmatpush1.msra.mxu0 0.0
    %453 = vmatprep.subr.mxu0 0.0
    %454 = vmatpush1.msra.mxu0 0.0
    %455 = vmatprep.subr.mxu0 0.0
    %456 = vmatpush1.msra.mxu0 0.0
    %457 = vmatprep.subr.mxu0 0.0
    %458 = vmatpush1.msra.mxu0 0.0
    %459 = vmatprep.subr.mxu0 0.0
    %460 = vmatpush1.msra.mxu0 0.0
    %461 = vmatprep.subr.mxu0 0.0
    %462 = vmatpush1.msra.mxu0 0.0
    %463 = vmatprep.subr.mxu0 0.0
    %464 = vmatpush1.msra.mxu0 0.0
    %465 = vmatprep.subr.mxu0 0.0
    %466 = vmatpush1.msra.mxu0 0.0
    %467 = vmatprep.subr.mxu0 0.0
    %468 = vmatpush1.msra.mxu0 0.0
    %469 = vmatprep.subr.mxu0 0.0
    %470 = vmatpush1.msra.mxu0 0.0
    %471 = vmatprep.subr.mxu0 0.0
    %472 = vmatpush1.msra.mxu0 0.0
    %473 = vmatprep.subr.mxu0 0.0
    %474 = vmatpush1.msra.mxu0 0.0
    %475 = vmatprep.subr.mxu0 0.0
    %476 = vmatpush1.msra.mxu0 0.0
    %477 = vmatprep.subr.mxu0 0.0
    %478 = vmatpush1.msra.mxu0 0.0
    %479 = vmatprep.subr.mxu0 0.0
    %480 = vmatpush1.msra.mxu0 0.0
    %481 = vmatprep.subr.mxu0 0.0
    %482 = vmatpush1.msra.mxu0 0.0
    %483 = vmatprep.subr.mxu0 0.0
    %484 = vmatpush1.msra.mxu0 0.0
    %485 = vmatprep.subr.mxu0 0.0
    %486 = vmatpush1.msra.mxu0 0.0
    %487 = vmatprep.subr.mxu0 0.0
    %488 = vmatpush1.msra.mxu0 0.0
    %489 = vmatprep.mubr.f32.mxu0 0.0
    %490 = vmatmul.mubr.f32.gmra.mrb[0].mxu0 %v423
    %v491 = vpop.f32.mrb[0].mxu0
    %v492 = vadd.f32 %v285, %v491
    %v493 = vpop.f32.mrb[0].mxu0
    %494 = vdwg.mxu0
    %v495 = vsel %vm359, %v492, -inf
    %496 = vmax.xlane.f32.xlu0 %v495
    %v497 = vpop.xlane.xlu0 %496
    %v498 = vsub.f32 %v492, %v497
    %v499 = vmul.f32 %v498, 1.442695
    %v500 = vpow.pop %v499
    %v501 = vsel %vm359, %v500, 0.0
    %502 = vadd.xlane.f32.xlu0 %v501
    %v503 = vpop.xlane.xlu0 %502
    %v504 = vlog2.pop %v503
    %v505 = vmul.f32 %v504, 0.6931472
    %v506 = vsub.f32 %v498, %v505
    %v508 = vrot.slane %v506, 7
    %vm510 = vcmask 1040384
    %v511 = vsel %vm510, %v371, %v508
    %vm512 = vcmask 9216
    %513 = vst.msk [vmem:[#allocation2] sm:$0x3] %vm512, %v511
    // Predicated region
    $region22: #{tpu_custom_call.1} parent=1 // pred_check
      _
    $region23: #{tpu_custom_call.1} parent=1 // pred_check_branch
      %515 = sbr.rel (0) target = $region25
    $region24: #{tpu_custom_call.1} parent=1 // pred_region
      %s517 = ssub.s32 32, 32
      %518 = vsyncadd [#allocation3], %s517
      %s520 = sshll.u32 [#allocation2], 4
      %s521 = int_to_ptr.vmem [resolvable:$true] %s520
      %523 = dma.vmem_to_hbm [thread:$0]  %s521, 32, %s5, [#allocation3]
    $region25: #{tpu_custom_call.1} parent=1 // pred_fallthru
      _
    // Predicated region
    $region26: #{tpu_custom_call.1} parent=1 // pred_check
      _
    $region27: #{tpu_custom_call.1} parent=1 // pred_check_branch
      %525 = sbr.rel (0) target = $region29
    $region28: #{tpu_custom_call.1} parent=1 // pred_region
      %526 = dma.done [#allocation3], 32
    $region29: #{tpu_custom_call.1} parent=1 // pred_fallthru
      _
    %527 = vsyncpa [#allocation3], 1

</llo_original>
